<compile_context>
chip_gen: v7x
topology: tpu7x:2x2x1
jax: 0.10.0
libtpu: 0.0.40
codegen_flags: <defaults>
</compile_context>

<pallas_src>
import functools

import jax
import jax.numpy as jnp
from jax.experimental import pallas as pl
from jax.experimental.pallas import tpu as pltpu

LANE = 128


def _round_up(x, m):
    return ((x + m - 1) // m) * m


# ---------------------------------------------------------------------------
# Fused Pallas kernel: all GCN layers + MLP head in one body.
# ---------------------------------------------------------------------------
def fused_wskip_kernel(alpha_ref, a_ref, x_ref, ws_ref, bs_ref, wm_ref, bm_ref,
                       o_ref, *, n_layers):
    a = a_ref[...]                       # [Np, Np]  (loaded once, reused L times)
    alpha = alpha_ref[0]                 # res_weight scalar from SMEM
    h = x_ref[...]                       # [Np, Dp]  current node features

    # Unrolled over the (static) layer count: GCN = A @ (X @ W^T) + b.
    for li in range(n_layers):
        xw = jnp.dot(h, ws_ref[li], preferred_element_type=jnp.float32)
        out = jnp.dot(a, xw, preferred_element_type=jnp.float32) + bs_ref[li]
        if li < n_layers - 1:
            out = jnp.maximum(out, 0.0)          # ReLU on all but the final layer
            if li > 0:
                out = out + alpha * h            # weighted skip on middle layers
        h = out

    # MLP head: X @ Wm^T + bm (lane-dense padded output).
    out = jnp.dot(h, wm_ref[...], preferred_element_type=jnp.float32) + bm_ref[...]
    o_ref[...] = out.astype(o_ref.dtype)


# ---------------------------------------------------------------------------
# One-time parameter packing (transpose to [in, out], zero-pad to 128 lanes,
# stack the per-layer weights).  Done once, outside the forward hot path.
# ---------------------------------------------------------------------------
def pack_params(params, input_dim, hid_dim, n_classes):
    d_pad = _round_up(max(input_dim, hid_dim), LANE)
    c_pad = _round_up(n_classes, LANE)

    ws, bs = [], []
    for W, b in params["layers"]:                     # W: [out, in], b: [out]
        wt = W.T                                      # [in, out] once, at pack time
        ws.append(jnp.pad(wt, ((0, d_pad - wt.shape[0]), (0, d_pad - wt.shape[1]))))
        bs.append(jnp.pad(b, (0, d_pad - b.shape[0])).reshape(1, d_pad))
    ws = jnp.stack(ws)                                # [L, Dp, Dp]
    bs = jnp.stack(bs)                                # [L, 1, Dp]

    Wm, bm = params["mlp"]
    wm = jnp.pad(Wm.T, ((0, d_pad - Wm.shape[1]), (0, c_pad - Wm.shape[0])))
    bmp = jnp.pad(bm, (0, c_pad - bm.shape[0])).reshape(1, c_pad)

    return {
        "alpha": params["res_weight"].reshape(1).astype(jnp.float32),
        "ws": ws.astype(jnp.float32),
        "bs": bs.astype(jnp.float32),
        "wm": wm.astype(jnp.float32),
        "bm": bmp.astype(jnp.float32),
    }


# ---------------------------------------------------------------------------
# Forward (single pallas_call, jitted).
# ---------------------------------------------------------------------------
@functools.partial(jax.jit, static_argnames=("n_classes",))
def wskip_gnn_forward(packed, X, A, *, n_classes):
    """Matches WSkipGNN.forward(X, A)."""
    N, in_dim = X.shape
    n_layers, d_pad, _ = packed["ws"].shape
    c_pad = packed["wm"].shape[1]
    n_pad = _round_up(N, LANE)            # lane-dense A and aligned rows

    x_p = jnp.pad(X.astype(jnp.float32), ((0, n_pad - N), (0, d_pad - in_dim)))
    a_p = jnp.pad(A.astype(jnp.float32), ((0, n_pad - N), (0, n_pad - N)))

    kernel = functools.partial(fused_wskip_kernel, n_layers=n_layers)
    out = pl.pallas_call(
        kernel,
        out_shape=jax.ShapeDtypeStruct((n_pad, c_pad), jnp.float32),
        in_specs=[
            pl.BlockSpec(memory_space=pltpu.SMEM),   # alpha (res_weight), (1,)
            pl.BlockSpec(memory_space=pltpu.VMEM),   # A_pad    [Np, Np]
            pl.BlockSpec(memory_space=pltpu.VMEM),   # X_pad    [Np, Dp]
            pl.BlockSpec(memory_space=pltpu.VMEM),   # W^T stack [L, Dp, Dp]
            pl.BlockSpec(memory_space=pltpu.VMEM),   # b stack   [L, 1, Dp]
            pl.BlockSpec(memory_space=pltpu.VMEM),   # Wm^T      [Dp, Cp]
            pl.BlockSpec(memory_space=pltpu.VMEM),   # bm        [1, Cp]
        ],
        out_specs=pl.BlockSpec(memory_space=pltpu.VMEM),
    )(packed["alpha"], a_p, x_p, packed["ws"], packed["bs"],
      packed["wm"], packed["bm"])

    return out[:N, :n_classes]            # strip lane/row padding

# TODO(synk): for large N, tile A with a (parallel rows x reduction cols) grid
# and bf16 operands instead of whole-array VMEM blocks (v7x has 64 MiB VMEM).


# ---------------------------------------------------------------------------
# Deterministic parameter init (xavier_uniform_ weights, zero biases)
# ---------------------------------------------------------------------------
def xavier_uniform(key, out_dim, in_dim):
    bound = jnp.sqrt(6.0 / (in_dim + out_dim))
    return jax.random.uniform(key, (out_dim, in_dim), jnp.float32, -bound, bound)


def init_params(key, input_dim, hid_dim, n_classes, n_layers,
                init_res_weight=0.3):
    keys = jax.random.split(key, n_layers + 1)
    layers = []
    dims = [input_dim] + [hid_dim] * n_layers
    for i in range(n_layers):
        W = xavier_uniform(keys[i], dims[i + 1], dims[i])
        b = jnp.zeros((dims[i + 1],), jnp.float32)
        layers.append((W, b))
    Wm = xavier_uniform(keys[-1], n_classes, hid_dim)
    bm = jnp.zeros((n_classes,), jnp.float32)
    return {
        "layers": layers,
        "mlp": (Wm, bm),
        "res_weight": jnp.full((1,), init_res_weight, jnp.float32),
    }


# ---------------------------------------------------------------------------
# Pure-JAX reference (for correctness check)
# ---------------------------------------------------------------------------
def reference_forward(params, X, A):
    layers = params["layers"]
    alpha = params["res_weight"][0]

    def gcn(X, W, b):
        return A @ (X @ W.T) + b[None, :]

    W0, b0 = layers[0]
    X = jax.nn.relu(gcn(X, W0, b0))
    for W, b in layers[1:-1]:
        res = X
        X = jax.nn.relu(gcn(X, W, b))
        X = X + alpha * res
    Wl, bl = layers[-1]
    X = gcn(X, Wl, bl)
    Wm, bm = params["mlp"]
    return X @ Wm.T + bm[None, :]


# ---------------------------------------------------------------------------
if __name__ == "__main__":
    N = 64           # number of nodes
    input_dim = 16
    hid_dim = 32
    n_classes = 8
    n_layers = 3

    key = jax.random.PRNGKey(0)
    k_param, k_x, k_a = jax.random.split(key, 3)

    params = init_params(k_param, input_dim, hid_dim, n_classes, n_layers)
    packed = pack_params(params, input_dim, hid_dim, n_classes)

    # node features
    X = jax.random.normal(k_x, (N, input_dim), jnp.float32)

    # symmetric, self-loop, D^-1/2 (A+I) D^-1/2 normalized adjacency (plain-JAX glue)
    adj = (jax.random.uniform(k_a, (N, N)) < 0.1).astype(jnp.float32)
    adj = jnp.maximum(adj, adj.T)
    adj = adj + jnp.eye(N, dtype=jnp.float32)
    deg = jnp.sum(adj, axis=1)
    d_inv_sqrt = 1.0 / jnp.sqrt(deg)
    A = adj * d_inv_sqrt[:, None] * d_inv_sqrt[None, :]

    out = wskip_gnn_forward(packed, X, A, n_classes=n_classes)
    out = jax.block_until_ready(out)

    ref = reference_forward(params, X, A)
    assert out.shape == (N, n_classes)
    assert jnp.allclose(out, ref, atol=1e-4, rtol=1e-4), "mismatch vs reference"

    print("KERNEL_OK")
</pallas_src>

<mosaic_0001>
module attributes {stable_mosaic.version = 11 : i64} {
  func.func @fused_wskip_kernel(%arg0: memref<1xf32, #tpu.memory_space<smem>>, %arg1: memref<128x128xf32, #tpu.memory_space<vmem>>, %arg2: memref<128x128xf32, #tpu.memory_space<vmem>>, %arg3: memref<3x128x128xf32, #tpu.memory_space<vmem>>, %arg4: memref<3x1x128xf32, #tpu.memory_space<vmem>>, %arg5: memref<128x128xf32, #tpu.memory_space<vmem>>, %arg6: memref<1x128xf32, #tpu.memory_space<vmem>>, %arg7: memref<128x128xf32, #tpu.memory_space<vmem>>) attributes {dimension_semantics = [], scalar_prefetch = 0 : i64, scratch_operands = 0 : i64, tpu.core_type = #tpu.core_type<tc>} {
    %c0 = arith.constant 0 : index
    %c0_0 = arith.constant 0 : index
    %0 = vector.load %arg1[%c0, %c0_0] : memref<128x128xf32, #tpu.memory_space<vmem>>, vector<128x128xf32>
    %c0_1 = arith.constant 0 : index
    %1 = memref.load %arg0[%c0_1] : memref<1xf32, #tpu.memory_space<smem>>
    %c0_2 = arith.constant 0 : index
    %c0_3 = arith.constant 0 : index
    %2 = vector.load %arg2[%c0_2, %c0_3] : memref<128x128xf32, #tpu.memory_space<vmem>>, vector<128x128xf32>
    %c0_4 = arith.constant 0 : index
    %c0_5 = arith.constant 0 : index
    %c0_6 = arith.constant 0 : index
    %3 = vector.load %arg3[%c0_4, %c0_5, %c0_6] : memref<3x128x128xf32, #tpu.memory_space<vmem>>, vector<1x128x128xf32>
    %4 = vector.shape_cast %3 : vector<1x128x128xf32> to vector<128x128xf32>
    %cst = arith.constant dense<0.000000e+00> : vector<128x128xf32>
    %5 = tpu.matmul %2, %4, %cst {dimension_numbers = #tpu.dot_dimension_numbers<[1], [0], [0], [1], [0, 0, 1, 1], [], []>} : vector<128x128xf32>, vector<128x128xf32>, vector<128x128xf32> -> vector<128x128xf32>
    %cst_7 = arith.constant dense<0.000000e+00> : vector<128x128xf32>
    %6 = tpu.matmul %0, %5, %cst_7 {dimension_numbers = #tpu.dot_dimension_numbers<[1], [0], [0], [1], [0, 0, 1, 1], [], []>} : vector<128x128xf32>, vector<128x128xf32>, vector<128x128xf32> -> vector<128x128xf32>
    %c0_8 = arith.constant 0 : index
    %c0_9 = arith.constant 0 : index
    %c0_10 = arith.constant 0 : index
    %7 = vector.load %arg4[%c0_8, %c0_9, %c0_10] : memref<3x1x128xf32, #tpu.memory_space<vmem>>, vector<1x1x128xf32>
    %8 = vector.shape_cast %7 : vector<1x1x128xf32> to vector<1x128xf32>
    %9 = vector.broadcast %8 : vector<1x128xf32> to vector<128x128xf32>
    %10 = arith.addf %6, %9 : vector<128x128xf32>
    %cst_11 = arith.constant 0.000000e+00 : f32
    %11 = vector.broadcast %cst_11 : f32 to vector<128x128xf32>
    %12 = arith.maximumf %10, %11 : vector<128x128xf32>
    %c1 = arith.constant 1 : index
    %c0_12 = arith.constant 0 : index
    %c0_13 = arith.constant 0 : index
    %13 = vector.load %arg3[%c1, %c0_12, %c0_13] : memref<3x128x128xf32, #tpu.memory_space<vmem>>, vector<1x128x128xf32>
    %14 = vector.shape_cast %13 : vector<1x128x128xf32> to vector<128x128xf32>
    %cst_14 = arith.constant dense<0.000000e+00> : vector<128x128xf32>
    %15 = tpu.matmul %12, %14, %cst_14 {dimension_numbers = #tpu.dot_dimension_numbers<[1], [0], [0], [1], [0, 0, 1, 1], [], []>} : vector<128x128xf32>, vector<128x128xf32>, vector<128x128xf32> -> vector<128x128xf32>
    %cst_15 = arith.constant dense<0.000000e+00> : vector<128x128xf32>
    %16 = tpu.matmul %0, %15, %cst_15 {dimension_numbers = #tpu.dot_dimension_numbers<[1], [0], [0], [1], [0, 0, 1, 1], [], []>} : vector<128x128xf32>, vector<128x128xf32>, vector<128x128xf32> -> vector<128x128xf32>
    %c1_16 = arith.constant 1 : index
    %c0_17 = arith.constant 0 : index
    %c0_18 = arith.constant 0 : index
    %17 = vector.load %arg4[%c1_16, %c0_17, %c0_18] : memref<3x1x128xf32, #tpu.memory_space<vmem>>, vector<1x1x128xf32>
    %18 = vector.shape_cast %17 : vector<1x1x128xf32> to vector<1x128xf32>
    %19 = vector.broadcast %18 : vector<1x128xf32> to vector<128x128xf32>
    %20 = arith.addf %16, %19 : vector<128x128xf32>
    %cst_19 = arith.constant 0.000000e+00 : f32
    %21 = vector.broadcast %cst_19 : f32 to vector<128x128xf32>
    %22 = arith.maximumf %20, %21 : vector<128x128xf32>
    %23 = vector.broadcast %1 : f32 to vector<128x128xf32>
    %24 = arith.mulf %23, %12 : vector<128x128xf32>
    %25 = arith.addf %22, %24 : vector<128x128xf32>
    %c2 = arith.constant 2 : index
    %c0_20 = arith.constant 0 : index
    %c0_21 = arith.constant 0 : index
    %26 = vector.load %arg3[%c2, %c0_20, %c0_21] : memref<3x128x128xf32, #tpu.memory_space<vmem>>, vector<1x128x128xf32>
    %27 = vector.shape_cast %26 : vector<1x128x128xf32> to vector<128x128xf32>
    %cst_22 = arith.constant dense<0.000000e+00> : vector<128x128xf32>
    %28 = tpu.matmul %25, %27, %cst_22 {dimension_numbers = #tpu.dot_dimension_numbers<[1], [0], [0], [1], [0, 0, 1, 1], [], []>} : vector<128x128xf32>, vector<128x128xf32>, vector<128x128xf32> -> vector<128x128xf32>
    %cst_23 = arith.constant dense<0.000000e+00> : vector<128x128xf32>
    %29 = tpu.matmul %0, %28, %cst_23 {dimension_numbers = #tpu.dot_dimension_numbers<[1], [0], [0], [1], [0, 0, 1, 1], [], []>} : vector<128x128xf32>, vector<128x128xf32>, vector<128x128xf32> -> vector<128x128xf32>
    %c2_24 = arith.constant 2 : index
    %c0_25 = arith.constant 0 : index
    %c0_26 = arith.constant 0 : index
    %30 = vector.load %arg4[%c2_24, %c0_25, %c0_26] : memref<3x1x128xf32, #tpu.memory_space<vmem>>, vector<1x1x128xf32>
    %31 = vector.shape_cast %30 : vector<1x1x128xf32> to vector<1x128xf32>
    %32 = vector.broadcast %31 : vector<1x128xf32> to vector<128x128xf32>
    %33 = arith.addf %29, %32 : vector<128x128xf32>
    %c0_27 = arith.constant 0 : index
    %c0_28 = arith.constant 0 : index
    %34 = vector.load %arg5[%c0_27, %c0_28] : memref<128x128xf32, #tpu.memory_space<vmem>>, vector<128x128xf32>
    %cst_29 = arith.constant dense<0.000000e+00> : vector<128x128xf32>
    %35 = tpu.matmul %33, %34, %cst_29 {dimension_numbers = #tpu.dot_dimension_numbers<[1], [0], [0], [1], [0, 0, 1, 1], [], []>} : vector<128x128xf32>, vector<128x128xf32>, vector<128x128xf32> -> vector<128x128xf32>
    %c0_30 = arith.constant 0 : index
    %c0_31 = arith.constant 0 : index
    %36 = vector.load %arg6[%c0_30, %c0_31] : memref<1x128xf32, #tpu.memory_space<vmem>>, vector<1x128xf32>
    %37 = vector.broadcast %36 : vector<1x128xf32> to vector<128x128xf32>
    %38 = arith.addf %35, %37 : vector<128x128xf32>
    %c0_32 = arith.constant 0 : index
    %c0_33 = arith.constant 0 : index
    %39 = vector.load %arg7[%c0_32, %c0_33] : memref<128x128xf32, #tpu.memory_space<vmem>>, vector<128x128xf32>
    tpu.vector_store %arg7[%c0_32, %c0_33], %38 {strides = array<i32>} : memref<128x128xf32, #tpu.memory_space<vmem>>, vector<128x128xf32>,
    return
  }
}

</mosaic_0001>

<llo_original>
// kernel: wskip_gnn_forward.1
$region0: #{wskip_gnn_forward.1}
  #allocation0 [shape = 'u32[]', space=smem, size = 0x4, offset = 0x4, fixed_abs, tag = 'smem constant byte address 0x4 - core index']
  #allocation1 [shape = 'u32[144,128]{1,0:T(1,128)}', space=vmem, size = 0x12000, scoped, tag = 'internal scratch']
  #allocation2 [shape = 'f32[1]{0:T(128)S(6)}', space=smem, size = 0x200, scoped, tag = 'scoped memory for wskip_gnn_forward.1']
  %s0 = inlined_call_operand.<no memory space> [shape: f32[1], index: 0, kind: input, shape index: {}]
  %s1 = inlined_call_operand.vmem [shape: f32[128,128], index: 1, kind: input, shape index: {}]
  %s2 = inlined_call_operand.vmem [shape: f32[128,128], index: 2, kind: input, shape index: {}]
  %s3 = inlined_call_operand.vmem [shape: f32[3,128,128], index: 3, kind: input, shape index: {}]
  %s4 = inlined_call_operand.vmem [shape: f32[3,1,128], index: 4, kind: input, shape index: {}]
  %s5 = inlined_call_operand.hbm [shape: f32[128,128], index: 5, kind: input, shape index: {}]
  %s6 = inlined_call_operand.vmem [shape: f32[1,128], index: 6, kind: input, shape index: {}]
  %s7 = inlined_call_operand.vmem [shape: f32[128,128], index: 7, kind: output, shape index: {}]
  %s8 = sld [smem:[#allocation0]]
  $region42: #{wskip_gnn_forward.1} parent=0
    _
  %s10 = ssub.s32 1, %s8
  %s11 = scalar_select 0, %s10, %s8
  %12 = sst [smem:[#allocation2]] %s0
  $region1: #{wskip_gnn_forward.1} parent=0
    #allocation3 [shape = 'u8[65536]{0}', space=vmem, size = 0x10000, scoped, tag = 'input window, operand 5, single buffered']
    #allocation4 [shape = 's32[1]{0}', space=sflag, size = 0x4, scoped, tag = 'scoped memory for wskip_gnn_forward.1']
    %13 = vsyncpa [#allocation4], 0
    // Predicated region
    $region2: #{wskip_gnn_forward.1} parent=1 // pred_check
      _
    $region3: #{wskip_gnn_forward.1} parent=1 // pred_check_branch
      %15 = sbr.rel (0) target = $region5
    $region4: #{wskip_gnn_forward.1} parent=1 // pred_region
      _
    $region5: #{wskip_gnn_forward.1} parent=1 // pred_fallthru
      _
    // Predicated region
    $region6: #{wskip_gnn_forward.1} parent=1 // pred_check
      _
    $region7: #{wskip_gnn_forward.1} parent=1 // pred_check_branch
      %17 = sbr.rel (0) target = $region9
    $region8: #{wskip_gnn_forward.1} parent=1 // pred_region
      _
    $region9: #{wskip_gnn_forward.1} parent=1 // pred_fallthru
      _
    // Predicated region
    $region10: #{wskip_gnn_forward.1} parent=1 // pred_check
      _
    $region11: #{wskip_gnn_forward.1} parent=1 // pred_check_branch
      %19 = sbr.rel (0) target = $region13
    $region12: #{wskip_gnn_forward.1} parent=1 // pred_region
      _
    $region13: #{wskip_gnn_forward.1} parent=1 // pred_fallthru
      _
    // Predicated region
    $region14: #{wskip_gnn_forward.1} parent=1 // pred_check
      _
    $region15: #{wskip_gnn_forward.1} parent=1 // pred_check_branch
      %21 = sbr.rel (0) target = $region17
    $region16: #{wskip_gnn_forward.1} parent=1 // pred_region
      _
    $region17: #{wskip_gnn_forward.1} parent=1 // pred_fallthru
      _
    // Predicated region
    $region18: #{wskip_gnn_forward.1} parent=1 // pred_check
      _
    $region19: #{wskip_gnn_forward.1} parent=1 // pred_check_branch
      %23 = sbr.rel (0) target = $region21
    $region20: #{wskip_gnn_forward.1} parent=1 // pred_region
      _
    $region21: #{wskip_gnn_forward.1} parent=1 // pred_fallthru
      _
    // Predicated region
    $region22: #{wskip_gnn_forward.1} parent=1 // pred_check
      _
    $region23: #{wskip_gnn_forward.1} parent=1 // pred_check_branch
      %25 = sbr.rel (0) target = $region25
    $region24: #{wskip_gnn_forward.1} parent=1 // pred_region
      %s27 = ssub.s32 2048, 2048
      %28 = vsyncadd [#allocation4], %s27
      %s29 = sshll.u32 [#allocation3], 4
      %s30 = int_to_ptr.vmem [resolvable:$true] %s29
      %35 = dma.hbm_to_vmem [thread:$0]  %s5, 2048, %s30, [#allocation4], 128, 128, 8
    $region25: #{wskip_gnn_forward.1} parent=1 // pred_fallthru
      _
    // Predicated region
    $region26: #{wskip_gnn_forward.1} parent=1 // pred_check
      _
    $region27: #{wskip_gnn_forward.1} parent=1 // pred_check_branch
      %37 = sbr.rel (0) target = $region29
    $region28: #{wskip_gnn_forward.1} parent=1 // pred_region
      _
    $region29: #{wskip_gnn_forward.1} parent=1 // pred_fallthru
      _
    // Predicated region
    $region30: #{wskip_gnn_forward.1} parent=1 // pred_check
      _
    $region31: #{wskip_gnn_forward.1} parent=1 // pred_check_branch
      %39 = sbr.rel (0) target = $region33
    $region32: #{wskip_gnn_forward.1} parent=1 // pred_region
      %40 = dma.done [#allocation4], 2048
    $region33: #{wskip_gnn_forward.1} parent=1 // pred_fallthru
      _
    %v41 = vld [vmem:[%s1] sm:$0xff]
    %v42 = vld [vmem:[%s1 + $0x8] sm:$0xff]
    %v43 = vld [vmem:[%s1 + $0x10] sm:$0xff]
    %v44 = vld [vmem:[%s1 + $0x18] sm:$0xff]
    %v45 = vld [vmem:[%s1 + $0x20] sm:$0xff]
    %v46 = vld [vmem:[%s1 + $0x28] sm:$0xff]
    %v47 = vld [vmem:[%s1 + $0x30] sm:$0xff]
    %v48 = vld [vmem:[%s1 + $0x38] sm:$0xff]
    %v49 = vld [vmem:[%s1 + $0x40] sm:$0xff]
    %v50 = vld [vmem:[%s1 + $0x48] sm:$0xff]
    %v51 = vld [vmem:[%s1 + $0x50] sm:$0xff]
    %v52 = vld [vmem:[%s1 + $0x58] sm:$0xff]
    %v53 = vld [vmem:[%s1 + $0x60] sm:$0xff]
    %v54 = vld [vmem:[%s1 + $0x68] sm:$0xff]
    %v55 = vld [vmem:[%s1 + $0x70] sm:$0xff]
    %v56 = vld [vmem:[%s1 + $0x78] sm:$0xff]
    %s57 = sld [smem:[#allocation2]]
    %v58 = vld [vmem:[%s2] sm:$0xff]
    %v59 = vld [vmem:[%s2 + $0x8] sm:$0xff]
    %v60 = vld [vmem:[%s2 + $0x10] sm:$0xff]
    %v61 = vld [vmem:[%s2 + $0x18] sm:$0xff]
    %v62 = vld [vmem:[%s2 + $0x20] sm:$0xff]
    %v63 = vld [vmem:[%s2 + $0x28] sm:$0xff]
    %v64 = vld [vmem:[%s2 + $0x30] sm:$0xff]
    %v65 = vld [vmem:[%s2 + $0x38] sm:$0xff]
    %v66 = vld [vmem:[%s2 + $0x40] sm:$0xff]
    %v67 = vld [vmem:[%s2 + $0x48] sm:$0xff]
    %v68 = vld [vmem:[%s2 + $0x50] sm:$0xff]
    %v69 = vld [vmem:[%s2 + $0x58] sm:$0xff]
    %v70 = vld [vmem:[%s2 + $0x60] sm:$0xff]
    %v71 = vld [vmem:[%s2 + $0x68] sm:$0xff]
    %v72 = vld [vmem:[%s2 + $0x70] sm:$0xff]
    %v73 = vld [vmem:[%s2 + $0x78] sm:$0xff]
    %v74 = vld [vmem:[%s3] sm:$0xff]
    %v75 = vld [vmem:[%s3 + $0x8] sm:$0xff]
    %v76 = vld [vmem:[%s3 + $0x10] sm:$0xff]
    %v77 = vld [vmem:[%s3 + $0x18] sm:$0xff]
    %v78 = vld [vmem:[%s3 + $0x20] sm:$0xff]
    %v79 = vld [vmem:[%s3 + $0x28] sm:$0xff]
    %v80 = vld [vmem:[%s3 + $0x30] sm:$0xff]
    %v81 = vld [vmem:[%s3 + $0x38] sm:$0xff]
    %v82 = vld [vmem:[%s3 + $0x40] sm:$0xff]
    %v83 = vld [vmem:[%s3 + $0x48] sm:$0xff]
    %v84 = vld [vmem:[%s3 + $0x50] sm:$0xff]
    %v85 = vld [vmem:[%s3 + $0x58] sm:$0xff]
    %v86 = vld [vmem:[%s3 + $0x60] sm:$0xff]
    %v87 = vld [vmem:[%s3 + $0x68] sm:$0xff]
    %v88 = vld [vmem:[%s3 + $0x70] sm:$0xff]
    %v89 = vld [vmem:[%s3 + $0x78] sm:$0xff]
    %90 = vmatprep.subr.mxu0 0.0
    %91 = vmatpush1.msra.mxu0 %v74
    %92 = vmatprep.subr.mxu0 0.0
    %93 = vmatpush1.msra.mxu0 %v75
    %94 = vmatprep.subr.mxu0 0.0
    %95 = vmatpush1.msra.mxu0 %v76
    %96 = vmatprep.subr.mxu0 0.0
    %97 = vmatpush1.msra.mxu0 %v77
    %98 = vmatprep.subr.mxu0 0.0
    %99 = vmatpush1.msra.mxu0 %v78
    %100 = vmatprep.subr.mxu0 0.0
    %101 = vmatpush1.msra.mxu0 %v79
    %102 = vmatprep.subr.mxu0 0.0
    %103 = vmatpush1.msra.mxu0 %v80
    %104 = vmatprep.subr.mxu0 0.0
    %105 = vmatpush1.msra.mxu0 %v81
    %106 = vmatprep.subr.mxu0 0.0
    %107 = vmatpush1.msra.mxu0 %v82
    %108 = vmatprep.subr.mxu0 0.0
    %109 = vmatpush1.msra.mxu0 %v83
    %110 = vmatprep.subr.mxu0 0.0
    %111 = vmatpush1.msra.mxu0 %v84
    %112 = vmatprep.subr.mxu0 0.0
    %113 = vmatpush1.msra.mxu0 %v85
    %114 = vmatprep.subr.mxu0 0.0
    %115 = vmatpush1.msra.mxu0 %v86
    %116 = vmatprep.subr.mxu0 0.0
    %117 = vmatpush1.msra.mxu0 %v87
    %118 = vmatprep.subr.mxu0 0.0
    %119 = vmatpush1.msra.mxu0 %v88
    %120 = vmatprep.subr.mxu0 0.0
    %121 = vmatpush1.msra.mxu0 %v89
    %122 = vmatprep.subr.mxu0 0.0
    %123 = vmatpush1.msra.mxu0 0.0
    %124 = vmatprep.subr.mxu0 0.0
    %125 = vmatpush1.msra.mxu0 0.0
    %126 = vmatprep.subr.mxu0 0.0
    %127 = vmatpush1.msra.mxu0 0.0
    %128 = vmatprep.subr.mxu0 0.0
    %129 = vmatpush1.msra.mxu0 0.0
    %130 = vmatprep.subr.mxu0 0.0
    %131 = vmatpush1.msra.mxu0 0.0
    %132 = vmatprep.subr.mxu0 0.0
    %133 = vmatpush1.msra.mxu0 0.0
    %134 = vmatprep.subr.mxu0 0.0
    %135 = vmatpush1.msra.mxu0 0.0
    %136 = vmatprep.subr.mxu0 0.0
    %137 = vmatpush1.msra.mxu0 0.0
    %138 = vmatprep.subr.mxu0 0.0
    %139 = vmatpush1.msra.mxu0 0.0
    %140 = vmatprep.subr.mxu0 0.0
    %141 = vmatpush1.msra.mxu0 0.0
    %142 = vmatprep.subr.mxu0 0.0
    %143 = vmatpush1.msra.mxu0 0.0
    %144 = vmatprep.subr.mxu0 0.0
    %145 = vmatpush1.msra.mxu0 0.0
    %146 = vmatprep.subr.mxu0 0.0
    %147 = vmatpush1.msra.mxu0 0.0
    %148 = vmatprep.subr.mxu0 0.0
    %149 = vmatpush1.msra.mxu0 0.0
    %150 = vmatprep.subr.mxu0 0.0
    %151 = vmatpush1.msra.mxu0 0.0
    %152 = vmatprep.subr.mxu0 0.0
    %153 = vmatpush1.msra.mxu0 0.0
    %154 = vmatprep.mubr.f32.mxu0 0.0
    %155 = vmatmul.mubr.f32.gmra.mrb[0].mxu0 %v58
    %v156 = vpop.f32.mrb[0].mxu0
    %v157 = vadd.f32 0.0, %v156
    %v158 = vpop.f32.mrb[0].mxu0
    %159 = vmatprep.mubr.f32.mxu0 0.0
    %160 = vmatmul.mubr.f32.gmra.mrb[0].mxu0 %v59
    %v161 = vpop.f32.mrb[0].mxu0
    %v162 = vadd.f32 0.0, %v161
    %v163 = vpop.f32.mrb[0].mxu0
    %164 = vmatprep.mubr.f32.mxu0 0.0
    %165 = vmatmul.mubr.f32.gmra.mrb[0].mxu0 %v60
    %v166 = vpop.f32.mrb[0].mxu0
    %v167 = vadd.f32 0.0, %v166
    %v168 = vpop.f32.mrb[0].mxu0
    %169 = vmatprep.mubr.f32.mxu0 0.0
    %170 = vmatmul.mubr.f32.gmra.mrb[0].mxu0 %v61
    %v171 = vpop.f32.mrb[0].mxu0
    %v172 = vadd.f32 0.0, %v171
    %v173 = vpop.f32.mrb[0].mxu0
    %174 = vmatprep.mubr.f32.mxu0 0.0
    %175 = vmatmul.mubr.f32.gmra.mrb[0].mxu0 %v62
    %v176 = vpop.f32.mrb[0].mxu0
    %v177 = vadd.f32 0.0, %v176
    %v178 = vpop.f32.mrb[0].mxu0
    %179 = vmatprep.mubr.f32.mxu0 0.0
    %180 = vmatmul.mubr.f32.gmra.mrb[0].mxu0 %v63
    %v181 = vpop.f32.mrb[0].mxu0
    %v182 = vadd.f32 0.0, %v181
    %v183 = vpop.f32.mrb[0].mxu0
    %184 = vmatprep.mubr.f32.mxu0 0.0
    %185 = vmatmul.mubr.f32.gmra.mrb[0].mxu0 %v64
    %v186 = vpop.f32.mrb[0].mxu0
    %v187 = vadd.f32 0.0, %v186
    %v188 = vpop.f32.mrb[0].mxu0
    %189 = vmatprep.mubr.f32.mxu0 0.0
    %190 = vmatmul.mubr.f32.gmra.mrb[0].mxu0 %v65
    %v191 = vpop.f32.mrb[0].mxu0
    %v192 = vadd.f32 0.0, %v191
    %v193 = vpop.f32.mrb[0].mxu0
    %194 = vmatprep.mubr.f32.mxu0 0.0
    %195 = vmatmul.mubr.f32.gmra.mrb[0].mxu0 %v66
    %v196 = vpop.f32.mrb[0].mxu0
    %v197 = vadd.f32 0.0, %v196
    %v198 = vpop.f32.mrb[0].mxu0
    %199 = vmatprep.mubr.f32.mxu0 0.0
    %200 = vmatmul.mubr.f32.gmra.mrb[0].mxu0 %v67
    %v201 = vpop.f32.mrb[0].mxu0
    %v202 = vadd.f32 0.0, %v201
    %v203 = vpop.f32.mrb[0].mxu0
    %204 = vmatprep.mubr.f32.mxu0 0.0
    %205 = vmatmul.mubr.f32.gmra.mrb[0].mxu0 %v68
    %v206 = vpop.f32.mrb[0].mxu0
    %v207 = vadd.f32 0.0, %v206
    %v208 = vpop.f32.mrb[0].mxu0
    %209 = vmatprep.mubr.f32.mxu0 0.0
    %210 = vmatmul.mubr.f32.gmra.mrb[0].mxu0 %v69
    %v211 = vpop.f32.mrb[0].mxu0
    %v212 = vadd.f32 0.0, %v211
    %v213 = vpop.f32.mrb[0].mxu0
    %214 = vmatprep.mubr.f32.mxu0 0.0
    %215 = vmatmul.mubr.f32.gmra.mrb[0].mxu0 %v70
    %v216 = vpop.f32.mrb[0].mxu0
    %v217 = vadd.f32 0.0, %v216
    %v218 = vpop.f32.mrb[0].mxu0
    %219 = vmatprep.mubr.f32.mxu0 0.0
    %220 = vmatmul.mubr.f32.gmra.mrb[0].mxu0 %v71
    %v221 = vpop.f32.mrb[0].mxu0
    %v222 = vadd.f32 0.0, %v221
    %v223 = vpop.f32.mrb[0].mxu0
    %224 = vmatprep.mubr.f32.mxu0 0.0
    %225 = vmatmul.mubr.f32.gmra.mrb[0].mxu0 %v72
    %v226 = vpop.f32.mrb[0].mxu0
    %v227 = vadd.f32 0.0, %v226
    %v228 = vpop.f32.mrb[0].mxu0
    %229 = vmatprep.mubr.f32.mxu0 0.0
    %230 = vmatmul.mubr.f32.gmra.mrb[0].mxu0 %v73
    %v231 = vpop.f32.mrb[0].mxu0
    %v232 = vadd.f32 0.0, %v231
    %v233 = vpop.f32.mrb[0].mxu0
    %234 = vdwg.mxu0
    %v235 = vld [vmem:[%s4] sm:$0x1]
    %v237 = vlaneseq
    %v238 = vshrl.u32 %v237, 7
    %v239 = vsub.s32 0, %v238
    %v240 = vrot.slane %v235, %v239
    %242 = vmatprep.subr.mxu0 0.0
    %243 = vmatpush1.msra.mxu0 %v157
    %244 = vmatprep.subr.mxu0 0.0
    %245 = vmatpush1.msra.mxu0 %v162
    %246 = vmatprep.subr.mxu0 0.0
    %247 = vmatpush1.msra.mxu0 %v167
    %248 = vmatprep.subr.mxu0 0.0
    %249 = vmatpush1.msra.mxu0 %v172
    %250 = vmatprep.subr.mxu0 0.0
    %251 = vmatpush1.msra.mxu0 %v177
    %252 = vmatprep.subr.mxu0 0.0
    %253 = vmatpush1.msra.mxu0 %v182
    %254 = vmatprep.subr.mxu0 0.0
    %255 = vmatpush1.msra.mxu0 %v187
    %256 = vmatprep.subr.mxu0 0.0
    %257 = vmatpush1.msra.mxu0 %v192
    %258 = vmatprep.subr.mxu0 0.0
    %259 = vmatpush1.msra.mxu0 %v197
    %260 = vmatprep.subr.mxu0 0.0
    %261 = vmatpush1.msra.mxu0 %v202
    %262 = vmatprep.subr.mxu0 0.0
    %263 = vmatpush1.msra.mxu0 %v207
    %264 = vmatprep.subr.mxu0 0.0
    %265 = vmatpush1.msra.mxu0 %v212
    %266 = vmatprep.subr.mxu0 0.0
    %267 = vmatpush1.msra.mxu0 %v217
    %268 = vmatprep.subr.mxu0 0.0
    %269 = vmatpush1.msra.mxu0 %v222
    %270 = vmatprep.subr.mxu0 0.0
    %271 = vmatpush1.msra.mxu0 %v227
    %272 = vmatprep.subr.mxu0 0.0
    %273 = vmatpush1.msra.mxu0 %v232
    %274 = vmatprep.subr.mxu0 0.0
    %275 = vmatpush1.msra.mxu0 0.0
    %276 = vmatprep.subr.mxu0 0.0
    %277 = vmatpush1.msra.mxu0 0.0
    %278 = vmatprep.subr.mxu0 0.0
    %279 = vmatpush1.msra.mxu0 0.0
    %280 = vmatprep.subr.mxu0 0.0
    %281 = vmatpush1.msra.mxu0 0.0
    %282 = vmatprep.subr.mxu0 0.0
    %283 = vmatpush1.msra.mxu0 0.0
    %284 = vmatprep.subr.mxu0 0.0
    %285 = vmatpush1.msra.mxu0 0.0
    %286 = vmatprep.subr.mxu0 0.0
    %287 = vmatpush1.msra.mxu0 0.0
    %288 = vmatprep.subr.mxu0 0.0
    %289 = vmatpush1.msra.mxu0 0.0
    %290 = vmatprep.subr.mxu0 0.0
    %291 = vmatpush1.msra.mxu0 0.0
    %292 = vmatprep.subr.mxu0 0.0
    %293 = vmatpush1.msra.mxu0 0.0
    %294 = vmatprep.subr.mxu0 0.0
    %295 = vmatpush1.msra.mxu0 0.0
    %296 = vmatprep.subr.mxu0 0.0
    %297 = vmatpush1.msra.mxu0 0.0
    %298 = vmatprep.subr.mxu0 0.0
    %299 = vmatpush1.msra.mxu0 0.0
    %300 = vmatprep.subr.mxu0 0.0
    %301 = vmatpush1.msra.mxu0 0.0
    %302 = vmatprep.subr.mxu0 0.0
    %303 = vmatpush1.msra.mxu0 0.0
    %304 = vmatprep.subr.mxu0 0.0
    %305 = vmatpush1.msra.mxu0 0.0
    %306 = vmatprep.mubr.f32.mxu0 0.0
    %307 = vmatmul.mubr.f32.gmra.mrb[0].mxu0 %v41
    %v308 = vpop.f32.mrb[0].mxu0
    %v309 = vadd.f32 %v240, %v308
    %v310 = vpop.f32.mrb[0].mxu0
    %311 = vmatprep.mubr.f32.mxu0 0.0
    %312 = vmatmul.mubr.f32.gmra.mrb[0].mxu0 %v42
    %v313 = vpop.f32.mrb[0].mxu0
    %v314 = vadd.f32 %v240, %v313
    %v315 = vpop.f32.mrb[0].mxu0
    %316 = vmatprep.mubr.f32.mxu0 0.0
    %317 = vmatmul.mubr.f32.gmra.mrb[0].mxu0 %v43
    %v318 = vpop.f32.mrb[0].mxu0
    %v319 = vadd.f32 %v240, %v318
    %v320 = vpop.f32.mrb[0].mxu0
    %321 = vmatprep.mubr.f32.mxu0 0.0
    %322 = vmatmul.mubr.f32.gmra.mrb[0].mxu0 %v44
    %v323 = vpop.f32.mrb[0].mxu0
    %v324 = vadd.f32 %v240, %v323
    %v325 = vpop.f32.mrb[0].mxu0
    %326 = vmatprep.mubr.f32.mxu0 0.0
    %327 = vmatmul.mubr.f32.gmra.mrb[0].mxu0 %v45
    %v328 = vpop.f32.mrb[0].mxu0
    %v329 = vadd.f32 %v240, %v328
    %v330 = vpop.f32.mrb[0].mxu0
    %331 = vmatprep.mubr.f32.mxu0 0.0
    %332 = vmatmul.mubr.f32.gmra.mrb[0].mxu0 %v46
    %v333 = vpop.f32.mrb[0].mxu0
    %v334 = vadd.f32 %v240, %v333
    %v335 = vpop.f32.mrb[0].mxu0
    %336 = vmatprep.mubr.f32.mxu0 0.0
    %337 = vmatmul.mubr.f32.gmra.mrb[0].mxu0 %v47
    %v338 = vpop.f32.mrb[0].mxu0
    %v339 = vadd.f32 %v240, %v338
    %v340 = vpop.f32.mrb[0].mxu0
    %341 = vmatprep.mubr.f32.mxu0 0.0
    %342 = vmatmul.mubr.f32.gmra.mrb[0].mxu0 %v48
    %v343 = vpop.f32.mrb[0].mxu0
    %v344 = vadd.f32 %v240, %v343
    %v345 = vpop.f32.mrb[0].mxu0
    %346 = vmatprep.mubr.f32.mxu0 0.0
    %347 = vmatmul.mubr.f32.gmra.mrb[0].mxu0 %v49
    %v348 = vpop.f32.mrb[0].mxu0
    %v349 = vadd.f32 %v240, %v348
    %v350 = vpop.f32.mrb[0].mxu0
    %351 = vmatprep.mubr.f32.mxu0 0.0
    %352 = vmatmul.mubr.f32.gmra.mrb[0].mxu0 %v50
    %v353 = vpop.f32.mrb[0].mxu0
    %v354 = vadd.f32 %v240, %v353
    %v355 = vpop.f32.mrb[0].mxu0
    %356 = vmatprep.mubr.f32.mxu0 0.0
    %357 = vmatmul.mubr.f32.gmra.mrb[0].mxu0 %v51
    %v358 = vpop.f32.mrb[0].mxu0
    %v359 = vadd.f32 %v240, %v358
    %v360 = vpop.f32.mrb[0].mxu0
    %361 = vmatprep.mubr.f32.mxu0 0.0
    %362 = vmatmul.mubr.f32.gmra.mrb[0].mxu0 %v52
    %v363 = vpop.f32.mrb[0].mxu0
    %v364 = vadd.f32 %v240, %v363
    %v365 = vpop.f32.mrb[0].mxu0
    %366 = vmatprep.mubr.f32.mxu0 0.0
    %367 = vmatmul.mubr.f32.gmra.mrb[0].mxu0 %v53
    %v368 = vpop.f32.mrb[0].mxu0
    %v369 = vadd.f32 %v240, %v368
    %v370 = vpop.f32.mrb[0].mxu0
    %371 = vmatprep.mubr.f32.mxu0 0.0
    %372 = vmatmul.mubr.f32.gmra.mrb[0].mxu0 %v54
    %v373 = vpop.f32.mrb[0].mxu0
    %v374 = vadd.f32 %v240, %v373
    %v375 = vpop.f32.mrb[0].mxu0
    %376 = vmatprep.mubr.f32.mxu0 0.0
    %377 = vmatmul.mubr.f32.gmra.mrb[0].mxu0 %v55
    %v378 = vpop.f32.mrb[0].mxu0
    %v379 = vadd.f32 %v240, %v378
    %v380 = vpop.f32.mrb[0].mxu0
    %381 = vmatprep.mubr.f32.mxu0 0.0
    %382 = vmatmul.mubr.f32.gmra.mrb[0].mxu0 %v56
    %v383 = vpop.f32.mrb[0].mxu0
    %v384 = vadd.f32 %v240, %v383
    %v385 = vpop.f32.mrb[0].mxu0
    %386 = vdwg.mxu0
    %v387 = vmax.f32 %v309, 0.0
    %v388 = vmax.f32 %v314, 0.0
    %v389 = vmax.f32 %v319, 0.0
    %v390 = vmax.f32 %v324, 0.0
    %v391 = vmax.f32 %v329, 0.0
    %v392 = vmax.f32 %v334, 0.0
    %v393 = vmax.f32 %v339, 0.0
    %v394 = vmax.f32 %v344, 0.0
    %v395 = vmax.f32 %v349, 0.0
    %v396 = vmax.f32 %v354, 0.0
    %v397 = vmax.f32 %v359, 0.0
    %v398 = vmax.f32 %v364, 0.0
    %v399 = vmax.f32 %v369, 0.0
    %v400 = vmax.f32 %v374, 0.0
    %v401 = vmax.f32 %v379, 0.0
    %v402 = vmax.f32 %v384, 0.0
    %s403 = scalar_lea.vmem %s3, 128
    %v404 = vld [vmem:[%s403] sm:$0xff]
    %v405 = vld [vmem:[%s403 + $0x8] sm:$0xff]
    %v406 = vld [vmem:[%s403 + $0x10] sm:$0xff]
    %v407 = vld [vmem:[%s403 + $0x18] sm:$0xff]
    %v408 = vld [vmem:[%s403 + $0x20] sm:$0xff]
    %v409 = vld [vmem:[%s403 + $0x28] sm:$0xff]
    %v410 = vld [vmem:[%s403 + $0x30] sm:$0xff]
    %v411 = vld [vmem:[%s403 + $0x38] sm:$0xff]
    %v412 = vld [vmem:[%s403 + $0x40] sm:$0xff]
    %v413 = vld [vmem:[%s403 + $0x48] sm:$0xff]
    %v414 = vld [vmem:[%s403 + $0x50] sm:$0xff]
    %v415 = vld [vmem:[%s403 + $0x58] sm:$0xff]
    %v416 = vld [vmem:[%s403 + $0x60] sm:$0xff]
    %v417 = vld [vmem:[%s403 + $0x68] sm:$0xff]
    %v418 = vld [vmem:[%s403 + $0x70] sm:$0xff]
    %v419 = vld [vmem:[%s403 + $0x78] sm:$0xff]
    %420 = vmatprep.subr.mxu0 0.0
    %421 = vmatpush1.msra.mxu0 %v404
    %422 = vmatprep.subr.mxu0 0.0
    %423 = vmatpush1.msra.mxu0 %v405
    %424 = vmatprep.subr.mxu0 0.0
    %425 = vmatpush1.msra.mxu0 %v406
    %426 = vmatprep.subr.mxu0 0.0
    %427 = vmatpush1.msra.mxu0 %v407
    %428 = vmatprep.subr.mxu0 0.0
    %429 = vmatpush1.msra.mxu0 %v408
    %430 = vmatprep.subr.mxu0 0.0
    %431 = vmatpush1.msra.mxu0 %v409
    %432 = vmatprep.subr.mxu0 0.0
    %433 = vmatpush1.msra.mxu0 %v410
    %434 = vmatprep.subr.mxu0 0.0
    %435 = vmatpush1.msra.mxu0 %v411
    %436 = vmatprep.subr.mxu0 0.0
    %437 = vmatpush1.msra.mxu0 %v412
    %438 = vmatprep.subr.mxu0 0.0
    %439 = vmatpush1.msra.mxu0 %v413
    %440 = vmatprep.subr.mxu0 0.0
    %441 = vmatpush1.msra.mxu0 %v414
    %442 = vmatprep.subr.mxu0 0.0
    %443 = vmatpush1.msra.mxu0 %v415
    %444 = vmatprep.subr.mxu0 0.0
    %445 = vmatpush1.msra.mxu0 %v416
    %446 = vmatprep.subr.mxu0 0.0
    %447 = vmatpush1.msra.mxu0 %v417
    %448 = vmatprep.subr.mxu0 0.0
    %449 = vmatpush1.msra.mxu0 %v418
    %450 = vmatprep.subr.mxu0 0.0
    %451 = vmatpush1.msra.mxu0 %v419
    %452 = vmatprep.subr.mxu0 0.0
    %453 = vmatpush1.msra.mxu0 0.0
    %454 = vmatprep.subr.mxu0 0.0
    %455 = vmatpush1.msra.mxu0 0.0
    %456 = vmatprep.subr.mxu0 0.0
    %457 = vmatpush1.msra.mxu0 0.0
    %458 = vmatprep.subr.mxu0 0.0
    %459 = vmatpush1.msra.mxu0 0.0
    %460 = vmatprep.subr.mxu0 0.0
    %461 = vmatpush1.msra.mxu0 0.0
    %462 = vmatprep.subr.mxu0 0.0
    %463 = vmatpush1.msra.mxu0 0.0
    %464 = vmatprep.subr.mxu0 0.0
    %465 = vmatpush1.msra.mxu0 0.0
    %466 = vmatprep.subr.mxu0 0.0
    %467 = vmatpush1.msra.mxu0 0.0
    %468 = vmatprep.subr.mxu0 0.0
    %469 = vmatpush1.msra.mxu0 0.0
    %470 = vmatprep.subr.mxu0 0.0
    %471 = vmatpush1.msra.mxu0 0.0
    %472 = vmatprep.subr.mxu0 0.0
    %473 = vmatpush1.msra.mxu0 0.0
    %474 = vmatprep.subr.mxu0 0.0
    %475 = vmatpush1.msra.mxu0 0.0
    %476 = vmatprep.subr.mxu0 0.0
    %477 = vmatpush1.msra.mxu0 0.0
    %478 = vmatprep.subr.mxu0 0.0
    %479 = vmatpush1.msra.mxu0 0.0
    %480 = vmatprep.subr.mxu0 0.0
    %481 = vmatpush1.msra.mxu0 0.0
    %482 = vmatprep.subr.mxu0 0.0
    %483 = vmatpush1.msra.mxu0 0.0
    %484 = vmatprep.mubr.f32.mxu0 0.0
    %485 = vmatmul.mubr.f32.gmra.mrb[0].mxu0 %v387
    %v486 = vpop.f32.mrb[0].mxu0
    %v487 = vadd.f32 0.0, %v486
    %v488 = vpop.f32.mrb[0].mxu0
    %489 = vmatprep.mubr.f32.mxu0 0.0
    %490 = vmatmul.mubr.f32.gmra.mrb[0].mxu0 %v388
    %v491 = vpop.f32.mrb[0].mxu0
    %v492 = vadd.f32 0.0, %v491
    %v493 = vpop.f32.mrb[0].mxu0
    %494 = vmatprep.mubr.f32.mxu0 0.0
    %495 = vmatmul.mubr.f32.gmra.mrb[0].mxu0 %v389
    %v496 = vpop.f32.mrb[0].mxu0
    %v497 = vadd.f32 0.0, %v496
    %v498 = vpop.f32.mrb[0].mxu0
    %499 = vmatprep.mubr.f32.mxu0 0.0
    %500 = vmatmul.mubr.f32.gmra.mrb[0].mxu0 %v390
    %v501 = vpop.f32.mrb[0].mxu0
    %v502 = vadd.f32 0.0, %v501
    %v503 = vpop.f32.mrb[0].mxu0
    %504 = vmatprep.mubr.f32.mxu0 0.0
    %505 = vmatmul.mubr.f32.gmra.mrb[0].mxu0 %v391
    %v506 = vpop.f32.mrb[0].mxu0
    %v507 = vadd.f32 0.0, %v506
    %v508 = vpop.f32.mrb[0].mxu0
    %509 = vmatprep.mubr.f32.mxu0 0.0
    %510 = vmatmul.mubr.f32.gmra.mrb[0].mxu0 %v392
    %v511 = vpop.f32.mrb[0].mxu0
    %v512 = vadd.f32 0.0, %v511
    %v513 = vpop.f32.mrb[0].mxu0
    %514 = vmatprep.mubr.f32.mxu0 0.0
    %515 = vmatmul.mubr.f32.gmra.mrb[0].mxu0 %v393
    %v516 = vpop.f32.mrb[0].mxu0
    %v517 = vadd.f32 0.0, %v516
    %v518 = vpop.f32.mrb[0].mxu0
    %519 = vmatprep.mubr.f32.mxu0 0.0
    %520 = vmatmul.mubr.f32.gmra.mrb[0].mxu0 %v394
    %v521 = vpop.f32.mrb[0].mxu0
    %v522 = vadd.f32 0.0, %v521
    %v523 = vpop.f32.mrb[0].mxu0
    %524 = vmatprep.mubr.f32.mxu0 0.0
    %525 = vmatmul.mubr.f32.gmra.mrb[0].mxu0 %v395
    %v526 = vpop.f32.mrb[0].mxu0
    %v527 = vadd.f32 0.0, %v526
    %v528 = vpop.f32.mrb[0].mxu0
    %529 = vmatprep.mubr.f32.mxu0 0.0
    %530 = vmatmul.mubr.f32.gmra.mrb[0].mxu0 %v396
    %v531 = vpop.f32.mrb[0].mxu0
    %v532 = vadd.f32 0.0, %v531
    %v533 = vpop.f32.mrb[0].mxu0
    %534 = vmatprep.mubr.f32.mxu0 0.0
    %535 = vmatmul.mubr.f32.gmra.mrb[0].mxu0 %v397
    %v536 = vpop.f32.mrb[0].mxu0
    %v537 = vadd.f32 0.0, %v536
    %v538 = vpop.f32.mrb[0].mxu0
    %539 = vmatprep.mubr.f32.mxu0 0.0
    %540 = vmatmul.mubr.f32.gmra.mrb[0].mxu0 %v398
    %v541 = vpop.f32.mrb[0].mxu0
    %v542 = vadd.f32 0.0, %v541
    %v543 = vpop.f32.mrb[0].mxu0
    %544 = vmatprep.mubr.f32.mxu0 0.0
    %545 = vmatmul.mubr.f32.gmra.mrb[0].mxu0 %v399
    %v546 = vpop.f32.mrb[0].mxu0
    %v547 = vadd.f32 0.0, %v546
    %v548 = vpop.f32.mrb[0].mxu0
    %549 = vmatprep.mubr.f32.mxu0 0.0
    %550 = vmatmul.mubr.f32.gmra.mrb[0].mxu0 %v400
    %v551 = vpop.f32.mrb[0].mxu0
    %v552 = vadd.f32 0.0, %v551
    %v553 = vpop.f32.mrb[0].mxu0
    %554 = vmatprep.mubr.f32.mxu0 0.0
    %555 = vmatmul.mubr.f32.gmra.mrb[0].mxu0 %v401
    %v556 = vpop.f32.mrb[0].mxu0
    %v557 = vadd.f32 0.0, %v556
    %v558 = vpop.f32.mrb[0].mxu0
    %559 = vmatprep.mubr.f32.mxu0 0.0
    %560 = vmatmul.mubr.f32.gmra.mrb[0].mxu0 %v402
    %v561 = vpop.f32.mrb[0].mxu0
    %v562 = vadd.f32 0.0, %v561
    %v563 = vpop.f32.mrb[0].mxu0
    %564 = vdwg.mxu0
    %s565 = scalar_lea.vmem %s4, 1
    %v566 = vld [vmem:[%s565] sm:$0x1]
    %v568 = vlaneseq
    %v569 = vshrl.u32 %v568, 7
    %v570 = vsub.s32 0, %v569
    %v571 = vrot.slane %v566, %v570
    %573 = vmatprep.subr.mxu0 0.0
    %574 = vmatpush1.msra.mxu0 %v487
    %575 = vmatprep.subr.mxu0 0.0
    %576 = vmatpush1.msra.mxu0 %v492
    %577 = vmatprep.subr.mxu0 0.0
    %578 = vmatpush1.msra.mxu0 %v497
    %579 = vmatprep.subr.mxu0 0.0
    %580 = vmatpush1.msra.mxu0 %v502
    %581 = vmatprep.subr.mxu0 0.0
    %582 = vmatpush1.msra.mxu0 %v507
    %583 = vmatprep.subr.mxu0 0.0
    %584 = vmatpush1.msra.mxu0 %v512
    %585 = vmatprep.subr.mxu0 0.0
    %586 = vmatpush1.msra.mxu0 %v517
    %587 = vmatprep.subr.mxu0 0.0
    %588 = vmatpush1.msra.mxu0 %v522
    %589 = vmatprep.subr.mxu0 0.0
    %590 = vmatpush1.msra.mxu0 %v527
    %591 = vmatprep.subr.mxu0 0.0
    %592 = vmatpush1.msra.mxu0 %v532
    %593 = vmatprep.subr.mxu0 0.0
    %594 = vmatpush1.msra.mxu0 %v537
    %595 = vmatprep.subr.mxu0 0.0
    %596 = vmatpush1.msra.mxu0 %v542
    %597 = vmatprep.subr.mxu0 0.0
    %598 = vmatpush1.msra.mxu0 %v547
    %599 = vmatprep.subr.mxu0 0.0
    %600 = vmatpush1.msra.mxu0 %v552
    %601 = vmatprep.subr.mxu0 0.0
    %602 = vmatpush1.msra.mxu0 %v557
    %603 = vmatprep.subr.mxu0 0.0
    %604 = vmatpush1.msra.mxu0 %v562
    %605 = vmatprep.subr.mxu0 0.0
    %606 = vmatpush1.msra.mxu0 0.0
    %607 = vmatprep.subr.mxu0 0.0
    %608 = vmatpush1.msra.mxu0 0.0
    %609 = vmatprep.subr.mxu0 0.0
    %610 = vmatpush1.msra.mxu0 0.0
    %611 = vmatprep.subr.mxu0 0.0
    %612 = vmatpush1.msra.mxu0 0.0
    %613 = vmatprep.subr.mxu0 0.0
    %614 = vmatpush1.msra.mxu0 0.0
    %615 = vmatprep.subr.mxu0 0.0
    %616 = vmatpush1.msra.mxu0 0.0
    %617 = vmatprep.subr.mxu0 0.0
    %618 = vmatpush1.msra.mxu0 0.0
    %619 = vmatprep.subr.mxu0 0.0
    %620 = vmatpush1.msra.mxu0 0.0
    %621 = vmatprep.subr.mxu0 0.0
    %622 = vmatpush1.msra.mxu0 0.0
    %623 = vmatprep.subr.mxu0 0.0
    %624 = vmatpush1.msra.mxu0 0.0
    %625 = vmatprep.subr.mxu0 0.0
    %626 = vmatpush1.msra.mxu0 0.0
    %627 = vmatprep.subr.mxu0 0.0
    %628 = vmatpush1.msra.mxu0 0.0
    %629 = vmatprep.subr.mxu0 0.0
    %630 = vmatpush1.msra.mxu0 0.0
    %631 = vmatprep.subr.mxu0 0.0
    %632 = vmatpush1.msra.mxu0 0.0
    %633 = vmatprep.subr.mxu0 0.0
    %634 = vmatpush1.msra.mxu0 0.0
    %635 = vmatprep.subr.mxu0 0.0
    %636 = vmatpush1.msra.mxu0 0.0
    %637 = vmatprep.mubr.f32.mxu0 0.0
    %638 = vmatmul.mubr.f32.gmra.mrb[0].mxu0 %v41
    %v639 = vpop.f32.mrb[0].mxu0
    %v640 = vadd.f32 %v571, %v639
    %v641 = vpop.f32.mrb[0].mxu0
    %642 = vmatprep.mubr.f32.mxu0 0.0
    %643 = vmatmul.mubr.f32.gmra.mrb[0].mxu0 %v42
    %v644 = vpop.f32.mrb[0].mxu0
    %v645 = vadd.f32 %v571, %v644
    %v646 = vpop.f32.mrb[0].mxu0
    %647 = vmatprep.mubr.f32.mxu0 0.0
    %648 = vmatmul.mubr.f32.gmra.mrb[0].mxu0 %v43
    %v649 = vpop.f32.mrb[0].mxu0
    %v650 = vadd.f32 %v571, %v649
    %v651 = vpop.f32.mrb[0].mxu0
    %652 = vmatprep.mubr.f32.mxu0 0.0
    %653 = vmatmul.mubr.f32.gmra.mrb[0].mxu0 %v44
    %v654 = vpop.f32.mrb[0].mxu0
    %v655 = vadd.f32 %v571, %v654
    %v656 = vpop.f32.mrb[0].mxu0
    %657 = vmatprep.mubr.f32.mxu0 0.0
    %658 = vmatmul.mubr.f32.gmra.mrb[0].mxu0 %v45
    %v659 = vpop.f32.mrb[0].mxu0
    %v660 = vadd.f32 %v571, %v659
    %v661 = vpop.f32.mrb[0].mxu0
    %662 = vmatprep.mubr.f32.mxu0 0.0
    %663 = vmatmul.mubr.f32.gmra.mrb[0].mxu0 %v46
    %v664 = vpop.f32.mrb[0].mxu0
    %v665 = vadd.f32 %v571, %v664
    %v666 = vpop.f32.mrb[0].mxu0
    %667 = vmatprep.mubr.f32.mxu0 0.0
    %668 = vmatmul.mubr.f32.gmra.mrb[0].mxu0 %v47
    %v669 = vpop.f32.mrb[0].mxu0
    %v670 = vadd.f32 %v571, %v669
    %v671 = vpop.f32.mrb[0].mxu0
    %672 = vmatprep.mubr.f32.mxu0 0.0
    %673 = vmatmul.mubr.f32.gmra.mrb[0].mxu0 %v48
    %v674 = vpop.f32.mrb[0].mxu0
    %v675 = vadd.f32 %v571, %v674
    %v676 = vpop.f32.mrb[0].mxu0
    %677 = vmatprep.mubr.f32.mxu0 0.0
    %678 = vmatmul.mubr.f32.gmra.mrb[0].mxu0 %v49
    %v679 = vpop.f32.mrb[0].mxu0
    %v680 = vadd.f32 %v571, %v679
    %v681 = vpop.f32.mrb[0].mxu0
    %682 = vmatprep.mubr.f32.mxu0 0.0
    %683 = vmatmul.mubr.f32.gmra.mrb[0].mxu0 %v50
    %v684 = vpop.f32.mrb[0].mxu0
    %v685 = vadd.f32 %v571, %v684
    %v686 = vpop.f32.mrb[0].mxu0
    %687 = vmatprep.mubr.f32.mxu0 0.0
    %688 = vmatmul.mubr.f32.gmra.mrb[0].mxu0 %v51
    %v689 = vpop.f32.mrb[0].mxu0
    %v690 = vadd.f32 %v571, %v689
    %v691 = vpop.f32.mrb[0].mxu0
    %692 = vmatprep.mubr.f32.mxu0 0.0
    %693 = vmatmul.mubr.f32.gmra.mrb[0].mxu0 %v52
    %v694 = vpop.f32.mrb[0].mxu0
    %v695 = vadd.f32 %v571, %v694
    %v696 = vpop.f32.mrb[0].mxu0
    %697 = vmatprep.mubr.f32.mxu0 0.0
    %698 = vmatmul.mubr.f32.gmra.mrb[0].mxu0 %v53
    %v699 = vpop.f32.mrb[0].mxu0
    %v700 = vadd.f32 %v571, %v699
    %v701 = vpop.f32.mrb[0].mxu0
    %702 = vmatprep.mubr.f32.mxu0 0.0
    %703 = vmatmul.mubr.f32.gmra.mrb[0].mxu0 %v54
    %v704 = vpop.f32.mrb[0].mxu0
    %v705 = vadd.f32 %v571, %v704
    %v706 = vpop.f32.mrb[0].mxu0
    %707 = vmatprep.mubr.f32.mxu0 0.0
    %708 = vmatmul.mubr.f32.gmra.mrb[0].mxu0 %v55
    %v709 = vpop.f32.mrb[0].mxu0
    %v710 = vadd.f32 %v571, %v709
    %v711 = vpop.f32.mrb[0].mxu0
    %712 = vmatprep.mubr.f32.mxu0 0.0
    %713 = vmatmul.mubr.f32.gmra.mrb[0].mxu0 %v56
    %v714 = vpop.f32.mrb[0].mxu0
    %v715 = vadd.f32 %v571, %v714
    %v716 = vpop.f32.mrb[0].mxu0
    %717 = vdwg.mxu0
    %v718 = vmax.f32 %v640, 0.0
    %v719 = vmax.f32 %v645, 0.0
    %v720 = vmax.f32 %v650, 0.0
    %v721 = vmax.f32 %v655, 0.0
    %v722 = vmax.f32 %v660, 0.0
    %v723 = vmax.f32 %v665, 0.0
    %v724 = vmax.f32 %v670, 0.0
    %v725 = vmax.f32 %v675, 0.0
    %v726 = vmax.f32 %v680, 0.0
    %v727 = vmax.f32 %v685, 0.0
    %v728 = vmax.f32 %v690, 0.0
    %v729 = vmax.f32 %v695, 0.0
    %v730 = vmax.f32 %v700, 0.0
    %v731 = vmax.f32 %v705, 0.0
    %v732 = vmax.f32 %v710, 0.0
    %v733 = vmax.f32 %v715, 0.0
    %v734 = vstv %s57
    %v735 = vmul.f32 %v734, %v387
    %v736 = vmul.f32 %v734, %v388
    %v737 = vmul.f32 %v734, %v389
    %v738 = vmul.f32 %v734, %v390
    %v739 = vmul.f32 %v734, %v391
    %v740 = vmul.f32 %v734, %v392
    %v741 = vmul.f32 %v734, %v393
    %v742 = vmul.f32 %v734, %v394
    %v743 = vmul.f32 %v734, %v395
    %v744 = vmul.f32 %v734, %v396
    %v745 = vmul.f32 %v734, %v397
    %v746 = vmul.f32 %v734, %v398
    %v747 = vmul.f32 %v734, %v399
    %v748 = vmul.f32 %v734, %v400
    %v749 = vmul.f32 %v734, %v401
    %v750 = vmul.f32 %v734, %v402
    %v751 = vadd.f32 %v718, %v735
    %v752 = vadd.f32 %v719, %v736
    %v753 = vadd.f32 %v720, %v737
    %v754 = vadd.f32 %v721, %v738
    %v755 = vadd.f32 %v722, %v739
    %v756 = vadd.f32 %v723, %v740
    %v757 = vadd.f32 %v724, %v741
    %v758 = vadd.f32 %v725, %v742
    %v759 = vadd.f32 %v726, %v743
    %v760 = vadd.f32 %v727, %v744
    %v761 = vadd.f32 %v728, %v745
    %v762 = vadd.f32 %v729, %v746
    %v763 = vadd.f32 %v730, %v747
    %v764 = vadd.f32 %v731, %v748
    %v765 = vadd.f32 %v732, %v749
    %v766 = vadd.f32 %v733, %v750
    %s767 = scalar_lea.vmem %s3, 256
    %v768 = vld [vmem:[%s767] sm:$0xff]
    %v769 = vld [vmem:[%s767 + $0x8] sm:$0xff]
    %v770 = vld [vmem:[%s767 + $0x10] sm:$0xff]
    %v771 = vld [vmem:[%s767 + $0x18] sm:$0xff]
    %v772 = vld [vmem:[%s767 + $0x20] sm:$0xff]
    %v773 = vld [vmem:[%s767 + $0x28] sm:$0xff]
    %v774 = vld [vmem:[%s767 + $0x30] sm:$0xff]
    %v775 = vld [vmem:[%s767 + $0x38] sm:$0xff]
    %v776 = vld [vmem:[%s767 + $0x40] sm:$0xff]
    %v777 = vld [vmem:[%s767 + $0x48] sm:$0xff]
    %v778 = vld [vmem:[%s767 + $0x50] sm:$0xff]
    %v779 = vld [vmem:[%s767 + $0x58] sm:$0xff]
    %v780 = vld [vmem:[%s767 + $0x60] sm:$0xff]
    %v781 = vld [vmem:[%s767 + $0x68] sm:$0xff]
    %v782 = vld [vmem:[%s767 + $0x70] sm:$0xff]
    %v783 = vld [vmem:[%s767 + $0x78] sm:$0xff]
    %784 = vmatprep.subr.mxu0 0.0
    %785 = vmatpush1.msra.mxu0 %v768
    %786 = vmatprep.subr.mxu0 0.0
    %787 = vmatpush1.msra.mxu0 %v769
    %788 = vmatprep.subr.mxu0 0.0
    %789 = vmatpush1.msra.mxu0 %v770
    %790 = vmatprep.subr.mxu0 0.0
    %791 = vmatpush1.msra.mxu0 %v771
    %792 = vmatprep.subr.mxu0 0.0
    %793 = vmatpush1.msra.mxu0 %v772
    %794 = vmatprep.subr.mxu0 0.0
    %795 = vmatpush1.msra.mxu0 %v773
    %796 = vmatprep.subr.mxu0 0.0
    %797 = vmatpush1.msra.mxu0 %v774
    %798 = vmatprep.subr.mxu0 0.0
    %799 = vmatpush1.msra.mxu0 %v775
    %800 = vmatprep.subr.mxu0 0.0
    %801 = vmatpush1.msra.mxu0 %v776
    %802 = vmatprep.subr.mxu0 0.0
    %803 = vmatpush1.msra.mxu0 %v777
    %804 = vmatprep.subr.mxu0 0.0
    %805 = vmatpush1.msra.mxu0 %v778
    %806 = vmatprep.subr.mxu0 0.0
    %807 = vmatpush1.msra.mxu0 %v779
    %808 = vmatprep.subr.mxu0 0.0
    %809 = vmatpush1.msra.mxu0 %v780
    %810 = vmatprep.subr.mxu0 0.0
    %811 = vmatpush1.msra.mxu0 %v781
    %812 = vmatprep.subr.mxu0 0.0
    %813 = vmatpush1.msra.mxu0 %v782
    %814 = vmatprep.subr.mxu0 0.0
    %815 = vmatpush1.msra.mxu0 %v783
    %816 = vmatprep.subr.mxu0 0.0
    %817 = vmatpush1.msra.mxu0 0.0
    %818 = vmatprep.subr.mxu0 0.0
    %819 = vmatpush1.msra.mxu0 0.0
    %820 = vmatprep.subr.mxu0 0.0
    %821 = vmatpush1.msra.mxu0 0.0
    %822 = vmatprep.subr.mxu0 0.0
    %823 = vmatpush1.msra.mxu0 0.0
    %824 = vmatprep.subr.mxu0 0.0
    %825 = vmatpush1.msra.mxu0 0.0
    %826 = vmatprep.subr.mxu0 0.0
    %827 = vmatpush1.msra.mxu0 0.0
    %828 = vmatprep.subr.mxu0 0.0
    %829 = vmatpush1.msra.mxu0 0.0
    %830 = vmatprep.subr.mxu0 0.0
    %831 = vmatpush1.msra.mxu0 0.0
    %832 = vmatprep.subr.mxu0 0.0
    %833 = vmatpush1.msra.mxu0 0.0
    %834 = vmatprep.subr.mxu0 0.0
    %835 = vmatpush1.msra.mxu0 0.0
    %836 = vmatprep.subr.mxu0 0.0
    %837 = vmatpush1.msra.mxu0 0.0
    %838 = vmatprep.subr.mxu0 0.0
    %839 = vmatpush1.msra.mxu0 0.0
    %840 = vmatprep.subr.mxu0 0.0
    %841 = vmatpush1.msra.mxu0 0.0
    %842 = vmatprep.subr.mxu0 0.0
    %843 = vmatpush1.msra.mxu0 0.0
    %844 = vmatprep.subr.mxu0 0.0
    %845 = vmatpush1.msra.mxu0 0.0
    %846 = vmatprep.subr.mxu0 0.0
    %847 = vmatpush1.msra.mxu0 0.0
    %848 = vmatprep.mubr.f32.mxu0 0.0
    %849 = vmatmul.mubr.f32.gmra.mrb[0].mxu0 %v751
    %v850 = vpop.f32.mrb[0].mxu0
    %v851 = vadd.f32 0.0, %v850
    %v852 = vpop.f32.mrb[0].mxu0
    %853 = vmatprep.mubr.f32.mxu0 0.0
    %854 = vmatmul.mubr.f32.gmra.mrb[0].mxu0 %v752
    %v855 = vpop.f32.mrb[0].mxu0
    %v856 = vadd.f32 0.0, %v855
    %v857 = vpop.f32.mrb[0].mxu0
    %858 = vmatprep.mubr.f32.mxu0 0.0
    %859 = vmatmul.mubr.f32.gmra.mrb[0].mxu0 %v753
    %v860 = vpop.f32.mrb[0].mxu0
    %v861 = vadd.f32 0.0, %v860
    %v862 = vpop.f32.mrb[0].mxu0
    %863 = vmatprep.mubr.f32.mxu0 0.0
    %864 = vmatmul.mubr.f32.gmra.mrb[0].mxu0 %v754
    %v865 = vpop.f32.mrb[0].mxu0
    %v866 = vadd.f32 0.0, %v865
    %v867 = vpop.f32.mrb[0].mxu0
    %868 = vmatprep.mubr.f32.mxu0 0.0
    %869 = vmatmul.mubr.f32.gmra.mrb[0].mxu0 %v755
    %v870 = vpop.f32.mrb[0].mxu0
    %v871 = vadd.f32 0.0, %v870
    %v872 = vpop.f32.mrb[0].mxu0
    %873 = vmatprep.mubr.f32.mxu0 0.0
    %874 = vmatmul.mubr.f32.gmra.mrb[0].mxu0 %v756
    %v875 = vpop.f32.mrb[0].mxu0
    %v876 = vadd.f32 0.0, %v875
    %v877 = vpop.f32.mrb[0].mxu0
    %878 = vmatprep.mubr.f32.mxu0 0.0
    %879 = vmatmul.mubr.f32.gmra.mrb[0].mxu0 %v757
    %v880 = vpop.f32.mrb[0].mxu0
    %v881 = vadd.f32 0.0, %v880
    %v882 = vpop.f32.mrb[0].mxu0
    %883 = vmatprep.mubr.f32.mxu0 0.0
    %884 = vmatmul.mubr.f32.gmra.mrb[0].mxu0 %v758
    %v885 = vpop.f32.mrb[0].mxu0
    %v886 = vadd.f32 0.0, %v885
    %v887 = vpop.f32.mrb[0].mxu0
    %888 = vmatprep.mubr.f32.mxu0 0.0
    %889 = vmatmul.mubr.f32.gmra.mrb[0].mxu0 %v759
    %v890 = vpop.f32.mrb[0].mxu0
    %v891 = vadd.f32 0.0, %v890
    %v892 = vpop.f32.mrb[0].mxu0
    %893 = vmatprep.mubr.f32.mxu0 0.0
    %894 = vmatmul.mubr.f32.gmra.mrb[0].mxu0 %v760
    %v895 = vpop.f32.mrb[0].mxu0
    %v896 = vadd.f32 0.0, %v895
    %v897 = vpop.f32.mrb[0].mxu0
    %898 = vmatprep.mubr.f32.mxu0 0.0
    %899 = vmatmul.mubr.f32.gmra.mrb[0].mxu0 %v761
    %v900 = vpop.f32.mrb[0].mxu0
    %v901 = vadd.f32 0.0, %v900
    %v902 = vpop.f32.mrb[0].mxu0
    %903 = vmatprep.mubr.f32.mxu0 0.0
    %904 = vmatmul.mubr.f32.gmra.mrb[0].mxu0 %v762
    %v905 = vpop.f32.mrb[0].mxu0
    %v906 = vadd.f32 0.0, %v905
    %v907 = vpop.f32.mrb[0].mxu0
    %908 = vmatprep.mubr.f32.mxu0 0.0
    %909 = vmatmul.mubr.f32.gmra.mrb[0].mxu0 %v763
    %v910 = vpop.f32.mrb[0].mxu0
    %v911 = vadd.f32 0.0, %v910
    %v912 = vpop.f32.mrb[0].mxu0
    %913 = vmatprep.mubr.f32.mxu0 0.0
    %914 = vmatmul.mubr.f32.gmra.mrb[0].mxu0 %v764
    %v915 = vpop.f32.mrb[0].mxu0
    %v916 = vadd.f32 0.0, %v915
    %v917 = vpop.f32.mrb[0].mxu0
    %918 = vmatprep.mubr.f32.mxu0 0.0
    %919 = vmatmul.mubr.f32.gmra.mrb[0].mxu0 %v765
    %v920 = vpop.f32.mrb[0].mxu0
    %v921 = vadd.f32 0.0, %v920
    %v922 = vpop.f32.mrb[0].mxu0
    %923 = vmatprep.mubr.f32.mxu0 0.0
    %924 = vmatmul.mubr.f32.gmra.mrb[0].mxu0 %v766
    %v925 = vpop.f32.mrb[0].mxu0
    %v926 = vadd.f32 0.0, %v925
    %v927 = vpop.f32.mrb[0].mxu0
    %928 = vdwg.mxu0
    %s929 = scalar_lea.vmem %s4, 2
    %v930 = vld [vmem:[%s929] sm:$0x1]
    %v932 = vlaneseq
    %v933 = vshrl.u32 %v932, 7
    %v934 = vsub.s32 0, %v933
    %v935 = vrot.slane %v930, %v934
    %937 = vmatprep.subr.mxu0 0.0
    %938 = vmatpush1.msra.mxu0 %v851
    %939 = vmatprep.subr.mxu0 0.0
    %940 = vmatpush1.msra.mxu0 %v856
    %941 = vmatprep.subr.mxu0 0.0
    %942 = vmatpush1.msra.mxu0 %v861
    %943 = vmatprep.subr.mxu0 0.0
    %944 = vmatpush1.msra.mxu0 %v866
    %945 = vmatprep.subr.mxu0 0.0
    %946 = vmatpush1.msra.mxu0 %v871
    %947 = vmatprep.subr.mxu0 0.0
    %948 = vmatpush1.msra.mxu0 %v876
    %949 = vmatprep.subr.mxu0 0.0
    %950 = vmatpush1.msra.mxu0 %v881
    %951 = vmatprep.subr.mxu0 0.0
    %952 = vmatpush1.msra.mxu0 %v886
    %953 = vmatprep.subr.mxu0 0.0
    %954 = vmatpush1.msra.mxu0 %v891
    %955 = vmatprep.subr.mxu0 0.0
    %956 = vmatpush1.msra.mxu0 %v896
    %957 = vmatprep.subr.mxu0 0.0
    %958 = vmatpush1.msra.mxu0 %v901
    %959 = vmatprep.subr.mxu0 0.0
    %960 = vmatpush1.msra.mxu0 %v906
    %961 = vmatprep.subr.mxu0 0.0
    %962 = vmatpush1.msra.mxu0 %v911
    %963 = vmatprep.subr.mxu0 0.0
    %964 = vmatpush1.msra.mxu0 %v916
    %965 = vmatprep.subr.mxu0 0.0
    %966 = vmatpush1.msra.mxu0 %v921
    %967 = vmatprep.subr.mxu0 0.0
    %968 = vmatpush1.msra.mxu0 %v926
    %969 = vmatprep.subr.mxu0 0.0
    %970 = vmatpush1.msra.mxu0 0.0
    %971 = vmatprep.subr.mxu0 0.0
    %972 = vmatpush1.msra.mxu0 0.0
    %973 = vmatprep.subr.mxu0 0.0
    %974 = vmatpush1.msra.mxu0 0.0
    %975 = vmatprep.subr.mxu0 0.0
    %976 = vmatpush1.msra.mxu0 0.0
    %977 = vmatprep.subr.mxu0 0.0
    %978 = vmatpush1.msra.mxu0 0.0
    %979 = vmatprep.subr.mxu0 0.0
    %980 = vmatpush1.msra.mxu0 0.0
    %981 = vmatprep.subr.mxu0 0.0
    %982 = vmatpush1.msra.mxu0 0.0
    %983 = vmatprep.subr.mxu0 0.0
    %984 = vmatpush1.msra.mxu0 0.0
    %985 = vmatprep.subr.mxu0 0.0
    %986 = vmatpush1.msra.mxu0 0.0
    %987 = vmatprep.subr.mxu0 0.0
    %988 = vmatpush1.msra.mxu0 0.0
    %989 = vmatprep.subr.mxu0 0.0
    %990 = vmatpush1.msra.mxu0 0.0
    %991 = vmatprep.subr.mxu0 0.0
    %992 = vmatpush1.msra.mxu0 0.0
    %993 = vmatprep.subr.mxu0 0.0
    %994 = vmatpush1.msra.mxu0 0.0
    %995 = vmatprep.subr.mxu0 0.0
    %996 = vmatpush1.msra.mxu0 0.0
    %997 = vmatprep.subr.mxu0 0.0
    %998 = vmatpush1.msra.mxu0 0.0
    %999 = vmatprep.subr.mxu0 0.0
    %1000 = vmatpush1.msra.mxu0 0.0
    %1001 = vmatprep.mubr.f32.mxu0 0.0
    %1002 = vmatmul.mubr.f32.gmra.mrb[0].mxu0 %v41
    %v1003 = vpop.f32.mrb[0].mxu0
    %v1004 = vadd.f32 %v935, %v1003
    %v1005 = vpop.f32.mrb[0].mxu0
    %1006 = vmatprep.mubr.f32.mxu0 0.0
    %1007 = vmatmul.mubr.f32.gmra.mrb[0].mxu0 %v42
    %v1008 = vpop.f32.mrb[0].mxu0
    %v1009 = vadd.f32 %v935, %v1008
    %v1010 = vpop.f32.mrb[0].mxu0
    %1011 = vmatprep.mubr.f32.mxu0 0.0
    %1012 = vmatmul.mubr.f32.gmra.mrb[0].mxu0 %v43
    %v1013 = vpop.f32.mrb[0].mxu0
    %v1014 = vadd.f32 %v935, %v1013
    %v1015 = vpop.f32.mrb[0].mxu0
    %1016 = vmatprep.mubr.f32.mxu0 0.0
    %1017 = vmatmul.mubr.f32.gmra.mrb[0].mxu0 %v44
    %v1018 = vpop.f32.mrb[0].mxu0
    %v1019 = vadd.f32 %v935, %v1018
    %v1020 = vpop.f32.mrb[0].mxu0
    %1021 = vmatprep.mubr.f32.mxu0 0.0
    %1022 = vmatmul.mubr.f32.gmra.mrb[0].mxu0 %v45
    %v1023 = vpop.f32.mrb[0].mxu0
    %v1024 = vadd.f32 %v935, %v1023
    %v1025 = vpop.f32.mrb[0].mxu0
    %1026 = vmatprep.mubr.f32.mxu0 0.0
    %1027 = vmatmul.mubr.f32.gmra.mrb[0].mxu0 %v46
    %v1028 = vpop.f32.mrb[0].mxu0
    %v1029 = vadd.f32 %v935, %v1028
    %v1030 = vpop.f32.mrb[0].mxu0
    %1031 = vmatprep.mubr.f32.mxu0 0.0
    %1032 = vmatmul.mubr.f32.gmra.mrb[0].mxu0 %v47
    %v1033 = vpop.f32.mrb[0].mxu0
    %v1034 = vadd.f32 %v935, %v1033
    %v1035 = vpop.f32.mrb[0].mxu0
    %1036 = vmatprep.mubr.f32.mxu0 0.0
    %1037 = vmatmul.mubr.f32.gmra.mrb[0].mxu0 %v48
    %v1038 = vpop.f32.mrb[0].mxu0
    %v1039 = vadd.f32 %v935, %v1038
    %v1040 = vpop.f32.mrb[0].mxu0
    %1041 = vmatprep.mubr.f32.mxu0 0.0
    %1042 = vmatmul.mubr.f32.gmra.mrb[0].mxu0 %v49
    %v1043 = vpop.f32.mrb[0].mxu0
    %v1044 = vadd.f32 %v935, %v1043
    %v1045 = vpop.f32.mrb[0].mxu0
    %1046 = vmatprep.mubr.f32.mxu0 0.0
    %1047 = vmatmul.mubr.f32.gmra.mrb[0].mxu0 %v50
    %v1048 = vpop.f32.mrb[0].mxu0
    %v1049 = vadd.f32 %v935, %v1048
    %v1050 = vpop.f32.mrb[0].mxu0
    %1051 = vmatprep.mubr.f32.mxu0 0.0
    %1052 = vmatmul.mubr.f32.gmra.mrb[0].mxu0 %v51
    %v1053 = vpop.f32.mrb[0].mxu0
    %v1054 = vadd.f32 %v935, %v1053
    %v1055 = vpop.f32.mrb[0].mxu0
    %1056 = vmatprep.mubr.f32.mxu0 0.0
    %1057 = vmatmul.mubr.f32.gmra.mrb[0].mxu0 %v52
    %v1058 = vpop.f32.mrb[0].mxu0
    %v1059 = vadd.f32 %v935, %v1058
    %v1060 = vpop.f32.mrb[0].mxu0
    %1061 = vmatprep.mubr.f32.mxu0 0.0
    %1062 = vmatmul.mubr.f32.gmra.mrb[0].mxu0 %v53
    %v1063 = vpop.f32.mrb[0].mxu0
    %v1064 = vadd.f32 %v935, %v1063
    %v1065 = vpop.f32.mrb[0].mxu0
    %1066 = vmatprep.mubr.f32.mxu0 0.0
    %1067 = vmatmul.mubr.f32.gmra.mrb[0].mxu0 %v54
    %v1068 = vpop.f32.mrb[0].mxu0
    %v1069 = vadd.f32 %v935, %v1068
    %v1070 = vpop.f32.mrb[0].mxu0
    %1071 = vmatprep.mubr.f32.mxu0 0.0
    %1072 = vmatmul.mubr.f32.gmra.mrb[0].mxu0 %v55
    %v1073 = vpop.f32.mrb[0].mxu0
    %v1074 = vadd.f32 %v935, %v1073
    %v1075 = vpop.f32.mrb[0].mxu0
    %1076 = vmatprep.mubr.f32.mxu0 0.0
    %1077 = vmatmul.mubr.f32.gmra.mrb[0].mxu0 %v56
    %v1078 = vpop.f32.mrb[0].mxu0
    %v1079 = vadd.f32 %v935, %v1078
    %v1080 = vpop.f32.mrb[0].mxu0
    %1081 = vdwg.mxu0
    %v1082 = vld [vmem:[#allocation3] sm:$0xff]
    %v1083 = vld [vmem:[#allocation3 + $0x8] sm:$0xff]
    %v1084 = vld [vmem:[#allocation3 + $0x10] sm:$0xff]
    %v1085 = vld [vmem:[#allocation3 + $0x18] sm:$0xff]
    %v1086 = vld [vmem:[#allocation3 + $0x20] sm:$0xff]
    %v1087 = vld [vmem:[#allocation3 + $0x28] sm:$0xff]
    %v1088 = vld [vmem:[#allocation3 + $0x30] sm:$0xff]
    %v1089 = vld [vmem:[#allocation3 + $0x38] sm:$0xff]
    %v1090 = vld [vmem:[#allocation3 + $0x40] sm:$0xff]
    %v1091 = vld [vmem:[#allocation3 + $0x48] sm:$0xff]
    %v1092 = vld [vmem:[#allocation3 + $0x50] sm:$0xff]
    %v1093 = vld [vmem:[#allocation3 + $0x58] sm:$0xff]
    %v1094 = vld [vmem:[#allocation3 + $0x60] sm:$0xff]
    %v1095 = vld [vmem:[#allocation3 + $0x68] sm:$0xff]
    %v1096 = vld [vmem:[#allocation3 + $0x70] sm:$0xff]
    %v1097 = vld [vmem:[#allocation3 + $0x78] sm:$0xff]
    %v1098 = vld [vmem:[%s6] sm:$0x1]
    %v1100 = vlaneseq
    %v1101 = vshrl.u32 %v1100, 7
    %v1102 = vsub.s32 0, %v1101
    %v1103 = vrot.slane %v1098, %v1102
    %1105 = vmatprep.subr.mxu0 0.0
    %1106 = vmatpush1.msra.mxu0 %v1082
    %1107 = vmatprep.subr.mxu0 0.0
    %1108 = vmatpush1.msra.mxu0 %v1083
    %1109 = vmatprep.subr.mxu0 0.0
    %1110 = vmatpush1.msra.mxu0 %v1084
    %1111 = vmatprep.subr.mxu0 0.0
    %1112 = vmatpush1.msra.mxu0 %v1085
    %1113 = vmatprep.subr.mxu0 0.0
    %1114 = vmatpush1.msra.mxu0 %v1086
    %1115 = vmatprep.subr.mxu0 0.0
    %1116 = vmatpush1.msra.mxu0 %v1087
    %1117 = vmatprep.subr.mxu0 0.0
    %1118 = vmatpush1.msra.mxu0 %v1088
    %1119 = vmatprep.subr.mxu0 0.0
    %1120 = vmatpush1.msra.mxu0 %v1089
    %1121 = vmatprep.subr.mxu0 0.0
    %1122 = vmatpush1.msra.mxu0 %v1090
    %1123 = vmatprep.subr.mxu0 0.0
    %1124 = vmatpush1.msra.mxu0 %v1091
    %1125 = vmatprep.subr.mxu0 0.0
    %1126 = vmatpush1.msra.mxu0 %v1092
    %1127 = vmatprep.subr.mxu0 0.0
    %1128 = vmatpush1.msra.mxu0 %v1093
    %1129 = vmatprep.subr.mxu0 0.0
    %1130 = vmatpush1.msra.mxu0 %v1094
    %1131 = vmatprep.subr.mxu0 0.0
    %1132 = vmatpush1.msra.mxu0 %v1095
    %1133 = vmatprep.subr.mxu0 0.0
    %1134 = vmatpush1.msra.mxu0 %v1096
    %1135 = vmatprep.subr.mxu0 0.0
    %1136 = vmatpush1.msra.mxu0 %v1097
    %1137 = vmatprep.subr.mxu0 0.0
    %1138 = vmatpush1.msra.mxu0 0.0
    %1139 = vmatprep.subr.mxu0 0.0
    %1140 = vmatpush1.msra.mxu0 0.0
    %1141 = vmatprep.subr.mxu0 0.0
    %1142 = vmatpush1.msra.mxu0 0.0
    %1143 = vmatprep.subr.mxu0 0.0
    %1144 = vmatpush1.msra.mxu0 0.0
    %1145 = vmatprep.subr.mxu0 0.0
    %1146 = vmatpush1.msra.mxu0 0.0
    %1147 = vmatprep.subr.mxu0 0.0
    %1148 = vmatpush1.msra.mxu0 0.0
    %1149 = vmatprep.subr.mxu0 0.0
    %1150 = vmatpush1.msra.mxu0 0.0
    %1151 = vmatprep.subr.mxu0 0.0
    %1152 = vmatpush1.msra.mxu0 0.0
    %1153 = vmatprep.subr.mxu0 0.0
    %1154 = vmatpush1.msra.mxu0 0.0
    %1155 = vmatprep.subr.mxu0 0.0
    %1156 = vmatpush1.msra.mxu0 0.0
    %1157 = vmatprep.subr.mxu0 0.0
    %1158 = vmatpush1.msra.mxu0 0.0
    %1159 = vmatprep.subr.mxu0 0.0
    %1160 = vmatpush1.msra.mxu0 0.0
    %1161 = vmatprep.subr.mxu0 0.0
    %1162 = vmatpush1.msra.mxu0 0.0
    %1163 = vmatprep.subr.mxu0 0.0
    %1164 = vmatpush1.msra.mxu0 0.0
    %1165 = vmatprep.subr.mxu0 0.0
    %1166 = vmatpush1.msra.mxu0 0.0
    %1167 = vmatprep.subr.mxu0 0.0
    %1168 = vmatpush1.msra.mxu0 0.0
    %1169 = vmatprep.mubr.f32.mxu0 0.0
    %1170 = vmatmul.mubr.f32.gmra.mrb[0].mxu0 %v1004
    %v1171 = vpop.f32.mrb[0].mxu0
    %v1172 = vadd.f32 %v1103, %v1171
    %v1173 = vpop.f32.mrb[0].mxu0
    %1174 = vmatprep.mubr.f32.mxu0 0.0
    %1175 = vmatmul.mubr.f32.gmra.mrb[0].mxu0 %v1009
    %v1176 = vpop.f32.mrb[0].mxu0
    %v1177 = vadd.f32 %v1103, %v1176
    %v1178 = vpop.f32.mrb[0].mxu0
    %1179 = vmatprep.mubr.f32.mxu0 0.0
    %1180 = vmatmul.mubr.f32.gmra.mrb[0].mxu0 %v1014
    %v1181 = vpop.f32.mrb[0].mxu0
    %v1182 = vadd.f32 %v1103, %v1181
    %v1183 = vpop.f32.mrb[0].mxu0
    %1184 = vmatprep.mubr.f32.mxu0 0.0
    %1185 = vmatmul.mubr.f32.gmra.mrb[0].mxu0 %v1019
    %v1186 = vpop.f32.mrb[0].mxu0
    %v1187 = vadd.f32 %v1103, %v1186
    %v1188 = vpop.f32.mrb[0].mxu0
    %1189 = vmatprep.mubr.f32.mxu0 0.0
    %1190 = vmatmul.mubr.f32.gmra.mrb[0].mxu0 %v1024
    %v1191 = vpop.f32.mrb[0].mxu0
    %v1192 = vadd.f32 %v1103, %v1191
    %v1193 = vpop.f32.mrb[0].mxu0
    %1194 = vmatprep.mubr.f32.mxu0 0.0
    %1195 = vmatmul.mubr.f32.gmra.mrb[0].mxu0 %v1029
    %v1196 = vpop.f32.mrb[0].mxu0
    %v1197 = vadd.f32 %v1103, %v1196
    %v1198 = vpop.f32.mrb[0].mxu0
    %1199 = vmatprep.mubr.f32.mxu0 0.0
    %1200 = vmatmul.mubr.f32.gmra.mrb[0].mxu0 %v1034
    %v1201 = vpop.f32.mrb[0].mxu0
    %v1202 = vadd.f32 %v1103, %v1201
    %v1203 = vpop.f32.mrb[0].mxu0
    %1204 = vmatprep.mubr.f32.mxu0 0.0
    %1205 = vmatmul.mubr.f32.gmra.mrb[0].mxu0 %v1039
    %v1206 = vpop.f32.mrb[0].mxu0
    %v1207 = vadd.f32 %v1103, %v1206
    %v1208 = vpop.f32.mrb[0].mxu0
    %1209 = vmatprep.mubr.f32.mxu0 0.0
    %1210 = vmatmul.mubr.f32.gmra.mrb[0].mxu0 %v1044
    %v1211 = vpop.f32.mrb[0].mxu0
    %v1212 = vadd.f32 %v1103, %v1211
    %v1213 = vpop.f32.mrb[0].mxu0
    %1214 = vmatprep.mubr.f32.mxu0 0.0
    %1215 = vmatmul.mubr.f32.gmra.mrb[0].mxu0 %v1049
    %v1216 = vpop.f32.mrb[0].mxu0
    %v1217 = vadd.f32 %v1103, %v1216
    %v1218 = vpop.f32.mrb[0].mxu0
    %1219 = vmatprep.mubr.f32.mxu0 0.0
    %1220 = vmatmul.mubr.f32.gmra.mrb[0].mxu0 %v1054
    %v1221 = vpop.f32.mrb[0].mxu0
    %v1222 = vadd.f32 %v1103, %v1221
    %v1223 = vpop.f32.mrb[0].mxu0
    %1224 = vmatprep.mubr.f32.mxu0 0.0
    %1225 = vmatmul.mubr.f32.gmra.mrb[0].mxu0 %v1059
    %v1226 = vpop.f32.mrb[0].mxu0
    %v1227 = vadd.f32 %v1103, %v1226
    %v1228 = vpop.f32.mrb[0].mxu0
    %1229 = vmatprep.mubr.f32.mxu0 0.0
    %1230 = vmatmul.mubr.f32.gmra.mrb[0].mxu0 %v1064
    %v1231 = vpop.f32.mrb[0].mxu0
    %v1232 = vadd.f32 %v1103, %v1231
    %v1233 = vpop.f32.mrb[0].mxu0
    %1234 = vmatprep.mubr.f32.mxu0 0.0
    %1235 = vmatmul.mubr.f32.gmra.mrb[0].mxu0 %v1069
    %v1236 = vpop.f32.mrb[0].mxu0
    %v1237 = vadd.f32 %v1103, %v1236
    %v1238 = vpop.f32.mrb[0].mxu0
    %1239 = vmatprep.mubr.f32.mxu0 0.0
    %1240 = vmatmul.mubr.f32.gmra.mrb[0].mxu0 %v1074
    %v1241 = vpop.f32.mrb[0].mxu0
    %v1242 = vadd.f32 %v1103, %v1241
    %v1243 = vpop.f32.mrb[0].mxu0
    %1244 = vmatprep.mubr.f32.mxu0 0.0
    %1245 = vmatmul.mubr.f32.gmra.mrb[0].mxu0 %v1079
    %v1246 = vpop.f32.mrb[0].mxu0
    %v1247 = vadd.f32 %v1103, %v1246
    %v1248 = vpop.f32.mrb[0].mxu0
    %1249 = vdwg.mxu0
    %1250 = vst [vmem:[%s7] sm:$0xff] %v1172
    %1251 = vst [vmem:[%s7 + $0x8] sm:$0xff] %v1177
    %1252 = vst [vmem:[%s7 + $0x10] sm:$0xff] %v1182
    %1253 = vst [vmem:[%s7 + $0x18] sm:$0xff] %v1187
    %1254 = vst [vmem:[%s7 + $0x20] sm:$0xff] %v1192
    %1255 = vst [vmem:[%s7 + $0x28] sm:$0xff] %v1197
    %1256 = vst [vmem:[%s7 + $0x30] sm:$0xff] %v1202
    %1257 = vst [vmem:[%s7 + $0x38] sm:$0xff] %v1207
    %1258 = vst [vmem:[%s7 + $0x40] sm:$0xff] %v1212
    %1259 = vst [vmem:[%s7 + $0x48] sm:$0xff] %v1217
    %1260 = vst [vmem:[%s7 + $0x50] sm:$0xff] %v1222
    %1261 = vst [vmem:[%s7 + $0x58] sm:$0xff] %v1227
    %1262 = vst [vmem:[%s7 + $0x60] sm:$0xff] %v1232
    %1263 = vst [vmem:[%s7 + $0x68] sm:$0xff] %v1237
    %1264 = vst [vmem:[%s7 + $0x70] sm:$0xff] %v1242
    %1265 = vst [vmem:[%s7 + $0x78] sm:$0xff] %v1247
    // Predicated region
    $region34: #{wskip_gnn_forward.1} parent=1 // pred_check
      _
    $region35: #{wskip_gnn_forward.1} parent=1 // pred_check_branch
      %1267 = sbr.rel (0) target = $region37
    $region36: #{wskip_gnn_forward.1} parent=1 // pred_region
      _
    $region37: #{wskip_gnn_forward.1} parent=1 // pred_fallthru
      _
    // Predicated region
    $region38: #{wskip_gnn_forward.1} parent=1 // pred_check
      _
    $region39: #{wskip_gnn_forward.1} parent=1 // pred_check_branch
      %1269 = sbr.rel (0) target = $region41
    $region40: #{wskip_gnn_forward.1} parent=1 // pred_region
      _
    $region41: #{wskip_gnn_forward.1} parent=1 // pred_fallthru
      _
    %1270 = vsyncpa [#allocation4], 1

</llo_original>
